<compile_context>
chip_gen: v7x
topology: tpu7x:2x2x1
jax: 0.10.0
libtpu: 0.0.40
codegen_flags: <defaults>
</compile_context>

<pallas_src>
import jax
import jax.numpy as jnp
from jax.experimental import pallas as pl
from jax.experimental.pallas import tpu as pltpu


def _margins_kernel(m_ref, o_ref):
    # Pure scalar passthrough on the SMEM path: o[i] = m[i].
    o_ref[0] = m_ref[0]
    o_ref[1] = m_ref[1]


def learnable_margins_forward(m1, m2):
    """Pallas equivalent of LearnableMargins.forward().

    Args:
      m1, m2: 0-d float32 arrays (the learnable margin parameters).
    Returns:
      (m1, m2) as 0-d float32 arrays, unchanged.
    """
    # Pack both scalars into one (2,) f32 array: a single SMEM ref in, one out.
    packed = jnp.stack(
        [jnp.asarray(m1, jnp.float32), jnp.asarray(m2, jnp.float32)]
    )

    out = pl.pallas_call(
        _margins_kernel,
        out_shape=jax.ShapeDtypeStruct((2,), jnp.float32),
        in_specs=[pl.BlockSpec(memory_space=pltpu.MemorySpace.SMEM)],
        out_specs=pl.BlockSpec(memory_space=pltpu.MemorySpace.SMEM),
    )(packed)

    # Split back to two 0-d scalars to match torch semantics.
    return out[0], out[1]


class LearnableMarginsPallas:
    """Mirror of the PyTorch module: holds m1, m2 and returns them on forward."""

    def __init__(self, m1_init=0.0, m2_init=0.6):
        # Deterministic parameter initialization (same as the torch __init__).
        self.m1 = jnp.array(m1_init, dtype=jnp.float32)
        self.m2 = jnp.array(m2_init, dtype=jnp.float32)

    def __call__(self):
        # NOTE: in production the right move is to return (self.m1, self.m2)
        # directly and let XLA fuse the read into the downstream loss; the
        # Pallas call is kept only because a kernel is required here.
        return learnable_margins_forward(self.m1, self.m2)


if __name__ == "__main__":
    # PRNGKey(0) is unused for parameter values (the torch module initializes
    # the margins from fixed constants), but kept for the required pattern.
    _ = jax.random.PRNGKey(0)

    module = LearnableMarginsPallas(m1_init=0.0, m2_init=0.6)
    m1_out, m2_out = module()
    jax.block_until_ready((m1_out, m2_out))

    # Verify exact semantics: forward returns the parameters unchanged.
    assert m1_out.shape == () and m2_out.shape == ()
    assert m1_out.dtype == jnp.float32 and m2_out.dtype == jnp.float32
    assert float(m1_out) == 0.0
    assert abs(float(m2_out) - 0.6) < 1e-7

    print("KERNEL_OK")
</pallas_src>

<mosaic_0001>
module attributes {stable_mosaic.version = 11 : i64} {
  func.func @_margins_kernel(%arg0: memref<2xf32, #tpu.memory_space<smem>>, %arg1: memref<2xf32, #tpu.memory_space<smem>>) attributes {dimension_semantics = [], scalar_prefetch = 0 : i64, scratch_operands = 0 : i64, tpu.core_type = #tpu.core_type<tc>} {
    %c0 = arith.constant 0 : index
    %0 = memref.load %arg0[%c0] : memref<2xf32, #tpu.memory_space<smem>>
    %c0_0 = arith.constant 0 : index
    %1 = memref.load %arg1[%c0_0] : memref<2xf32, #tpu.memory_space<smem>>
    memref.store %0, %arg1[%c0_0] : memref<2xf32, #tpu.memory_space<smem>>
    %c1 = arith.constant 1 : index
    %2 = memref.load %arg0[%c1] : memref<2xf32, #tpu.memory_space<smem>>
    %c1_1 = arith.constant 1 : index
    %3 = memref.load %arg1[%c1_1] : memref<2xf32, #tpu.memory_space<smem>>
    memref.store %2, %arg1[%c1_1] : memref<2xf32, #tpu.memory_space<smem>>
    return
  }
}

</mosaic_0001>

<llo_original>
// kernel: tpu_custom_call.1
$region0: #{tpu_custom_call.1}
  #allocation0 [shape = 'u32[]', space=smem, size = 0x4, offset = 0x4, fixed_abs, tag = 'smem constant byte address 0x4 - core index']
  #allocation1 [shape = 'u32[144,128]{1,0:T(1,128)}', space=vmem, size = 0x12000, scoped, tag = 'internal scratch']
  %s0 = inlined_call_operand.hbm [shape: f32[2], index: 0, kind: input, shape index: {}]
  %s1 = inlined_call_operand.hbm [shape: f32[2], index: 1, kind: output, shape index: {}]
  %s2 = sld [smem:[#allocation0]]
  $region18: #{tpu_custom_call.1} parent=0
    _
  %s4 = ssub.s32 1, %s2
  %s5 = scalar_select 0, %s4, %s2
  $region1: #{tpu_custom_call.1} parent=0
    #allocation2 [shape = 'u8[512]{0}', space=smem, size = 0x200, scoped, tag = 'input window, operand 0, single buffered']
    #allocation3 [shape = 's32[1]{0}', space=sflag, size = 0x4, scoped, tag = 'scoped memory for tpu_custom_call.1']
    #allocation4 [shape = 's32[1]{0}', space=sflag, size = 0x4, scoped, tag = 'scoped memory for tpu_custom_call.1']
    #allocation5 [shape = 'u8[512]{0}', space=smem, size = 0x200, scoped, tag = 'output window, operand 0, single buffered']
    %6 = vsyncpa [#allocation3], 0
    %7 = vsyncpa [#allocation4], 0
    // Predicated region
    $region2: #{tpu_custom_call.1} parent=1 // pred_check
      _
    $region3: #{tpu_custom_call.1} parent=1 // pred_check_branch
      %9 = sbr.rel (0) target = $region5
    $region4: #{tpu_custom_call.1} parent=1 // pred_region
      %s11 = ssub.s32 16, 16
      %12 = vsyncadd [#allocation3], %s11
      %15 = dma.hbm_to_smem %s0, 16, [#allocation2], [#allocation3]
    $region5: #{tpu_custom_call.1} parent=1 // pred_fallthru
      _
    // Predicated region
    $region6: #{tpu_custom_call.1} parent=1 // pred_check
      _
    $region7: #{tpu_custom_call.1} parent=1 // pred_check_branch
      %17 = sbr.rel (0) target = $region9
    $region8: #{tpu_custom_call.1} parent=1 // pred_region
      %18 = dma.done [#allocation3], 16
    $region9: #{tpu_custom_call.1} parent=1 // pred_fallthru
      _
    %19 = sfence
    %s20 = sld [smem:[#allocation2]]
    %s21 = scalar_lea.smem [#allocation5], 0
    %22 = sst [smem:[%s21]] %s20
    %s23 = sld [smem:[#allocation2 + $0x1]]
    %s24 = scalar_lea.smem [#allocation5], 1
    %25 = sst [smem:[%s24]] %s23
    // Predicated region
    $region10: #{tpu_custom_call.1} parent=1 // pred_check
      _
    $region11: #{tpu_custom_call.1} parent=1 // pred_check_branch
      %27 = sbr.rel (0) target = $region13
    $region12: #{tpu_custom_call.1} parent=1 // pred_region
      %s29 = ssub.s32 16, 16
      %30 = vsyncadd [#allocation4], %s29
      %33 = dma.smem_to_hbm [#allocation5], 16, %s1, [#allocation4]
    $region13: #{tpu_custom_call.1} parent=1 // pred_fallthru
      _
    // Predicated region
    $region14: #{tpu_custom_call.1} parent=1 // pred_check
      _
    $region15: #{tpu_custom_call.1} parent=1 // pred_check_branch
      %35 = sbr.rel (0) target = $region17
    $region16: #{tpu_custom_call.1} parent=1 // pred_region
      %36 = dma.done [#allocation4], 16
    $region17: #{tpu_custom_call.1} parent=1 // pred_fallthru
      _
    %37 = sfence
    %38 = vsyncpa [#allocation3], 1
    %39 = vsyncpa [#allocation4], 1

</llo_original>
